<compile_context>
chip_gen: v5e
topology: v5e:2x2
jax: 0.10.0
libtpu: 0.0.40
codegen_flags: <defaults>
</compile_context>

<pallas_src>
import jax
import jax.numpy as jnp
from jax.experimental import pallas as pl
from jax.experimental.pallas import tpu as pltpu


def qlinear_w4_kernel(x_lo_ref, x_hi_ref, wq_ref, scale_ref, zscale_ref,
                      bias_ref, xsum_ref, o_ref):
    kp = pl.program_id(2)

    @pl.when(kp == 0)
    def _():
        o_ref[...] = jnp.zeros_like(o_ref)

    # Unpack two 4-bit codes per byte.  int32 arithmetic is portable and the
    # sign-extension of int8 is killed by the masks; codes are 0..15 so the
    # cast to bf16 is exact and the MXU runs bf16 x bf16 with f32 accumulate.
    pw = wq_ref[...].astype(jnp.int32)                      # (tkp, tn)
    w_lo = (pw & 0xF).astype(jnp.bfloat16)                  # original rows [0, K/2)
    w_hi = ((pw >> 4) & 0xF).astype(jnp.bfloat16)           # original rows [K/2, K)

    o_ref[...] += (
        jnp.dot(x_lo_ref[...], w_lo, preferred_element_type=jnp.float32)
        + jnp.dot(x_hi_ref[...], w_hi, preferred_element_type=jnp.float32))

    @pl.when(kp == pl.num_programs(2) - 1)
    def _():
        # Per-output-channel affine applied once, in f32, on the small tile:
        #   y = (x @ Wq.T) * scale - sum_k(x) * (zero*scale) + bias
        o_ref[...] = (o_ref[...] * scale_ref[...]
                      - xsum_ref[...] * zscale_ref[...]
                      + bias_ref[...])


def repack_mixtral_linear(w_q, scale, zero, bias=None):
    """One-time (init) repack of the wrapped quantized Linear's tensors.

    w_q:   [N, K] integer 4-bit codes (values 0..15)
    scale: [N, 1] f32   zero: [N, 1] f32   bias: [1, N] / [N] f32 or None
    Returns (wq_packed[K/2, N] int8, scale_row, zero*scale row, bias_row).
    """
    N, K = w_q.shape
    assert K % 2 == 0
    wkn = jnp.asarray(w_q).T.astype(jnp.int32)              # [K, N]
    assert bool(jnp.all((wkn >= 0) & (wkn <= 15))), "W_q must be 4-bit codes"
    lo, hi = wkn[: K // 2], wkn[K // 2:]
    packed_u8 = (lo | (hi << 4)).astype(jnp.uint8)          # [K/2, N], 0..255
    wq_packed = jax.lax.bitcast_convert_type(packed_u8, jnp.int8)
    scale_row = jnp.asarray(scale).reshape(1, N).astype(jnp.float32)
    zscale_row = (jnp.asarray(scale) * jnp.asarray(zero)).reshape(1, N).astype(jnp.float32)
    if bias is None:
        bias_row = jnp.zeros((1, N), jnp.float32)
    else:
        bias_row = jnp.asarray(bias).reshape(1, N).astype(jnp.float32)
    return wq_packed, scale_row, zscale_row, bias_row


def _largest_tile(dim, pref, align):
    """Largest multiple of `align` dividing `dim`, <= pref; full dim if tiny."""
    if dim <= align:
        return dim
    t = (min(pref, dim) // align) * align
    while t > 0:
        if dim % t == 0:
            return t
        t -= align
    return dim


def quantized_linear_w4(x, wq_packed, scale_row, zscale_row, bias_row, *,
                        tb=None, tn=None, tk=None,
                        vmem_limit_bytes=48 * 1024 * 1024):
    """x:[B,K] f32, wq_packed:[K/2,N] int8 (nibble-packed), meta rows [1,N] f32."""
    B, K = x.shape
    KP2, N = wq_packed.shape
    assert KP2 * 2 == K
    assert K % 256 == 0, "K must be a multiple of 256 (packed 128-lane tiles)"

    tb = _largest_tile(B, 512 if tb is None else tb, 8)
    tn = _largest_tile(N, 512 if tn is None else tn, 128)
    tkp = _largest_tile(K // 2, (2048 if tk is None else tk) // 2, 128)
    assert tkp % 128 == 0

    # v7x shards the 'parallel' grid axes over its 2 TensorCores — keep at
    # least two parallel blocks when shapes allow.
    if (B // tb) * (N // tn) < 2 and tn > 128 and N % (tn // 2) == 0 and (tn // 2) % 128 == 0:
        tn //= 2

    kp_blocks = (K // 2) // tkp
    grid = (B // tb, N // tn, kp_blocks)

    xsum = jnp.sum(x.astype(jnp.float32), axis=-1, keepdims=True)   # [B, 1]
    x_bf = x.astype(jnp.bfloat16)                                    # halve x DMA

    return pl.pallas_call(
        qlinear_w4_kernel,
        out_shape=jax.ShapeDtypeStruct((B, N), jnp.float32),
        grid_spec=pltpu.PrefetchScalarGridSpec(
            num_scalar_prefetch=0,
            grid=grid,
            in_specs=[
                # x columns matching the low / high nibble halves of K.
                pl.BlockSpec((tb, tkp), lambda i, j, kp: (i, kp)),
                pl.BlockSpec((tb, tkp), lambda i, j, kp: (i, kp + kp_blocks)),
                # Packed int4 weights [K/2, N] (default double-buffering; add
                # pipeline_mode=pl.Buffered(3) only if a trace shows exposed DMA).
                pl.BlockSpec((tkp, tn), lambda i, j, kp: (kp, j)),
                # Lane-dense per-output-channel meta rows.
                pl.BlockSpec((1, tn), lambda i, j, kp: (0, j)),    # scale
                pl.BlockSpec((1, tn), lambda i, j, kp: (0, j)),    # zero*scale
                pl.BlockSpec((1, tn), lambda i, j, kp: (0, j)),    # bias
                # Precomputed f32 row-sum of x for the zero-point term.
                pl.BlockSpec((tb, 1), lambda i, j, kp: (i, 0)),
            ],
            out_specs=pl.BlockSpec((tb, tn), lambda i, j, kp: (i, j)),
        ),
        compiler_params=pltpu.CompilerParams(
            dimension_semantics=("parallel", "parallel", "arbitrary"),
            vmem_limit_bytes=vmem_limit_bytes,
        ),
    )(x_bf, x_bf, wq_packed, scale_row, zscale_row, bias_row, xsum)


if __name__ == "__main__":
    key = jax.random.PRNGKey(0)
    kx, kw, ks, kz, kb = jax.random.split(key, 5)

    # Small shapes: batch=8 tokens, hidden=512 -> 256 output channels.
    B, K, N = 8, 512, 256

    x = jax.random.normal(kx, (B, K), dtype=jnp.float32)
    # Deterministic synthetic 4-bit quantized weights + meta (no checkpoint).
    w_q = jax.random.randint(kw, (N, K), minval=0, maxval=16,
                             dtype=jnp.int32).astype(jnp.int8)
    scale = jax.random.uniform(ks, (N, 1), dtype=jnp.float32) * 0.05 + 0.01
    zero = jax.random.uniform(kz, (N, 1), dtype=jnp.float32) * 8.0
    bias = jax.random.normal(kb, (1, N), dtype=jnp.float32) * 0.1

    # Init-time repack (mirrors the wrapper's storage repack) — done once.
    wq_packed, scale_row, zscale_row, bias_row = repack_mixtral_linear(
        w_q, scale, zero, bias)

    # Small tiles so the test exercises the K reduction and both parallel
    # axes (grid = (1, 2, 2) at these shapes).
    out = quantized_linear_w4(x, wq_packed, scale_row, zscale_row, bias_row,
                              tk=256)
    out = jax.block_until_ready(out)

    # Pure-JAX f32 reference of the exact dequant math.
    w_ref = (w_q.astype(jnp.float32) - zero) * scale
    ref = x @ w_ref.T + bias
    assert out.shape == (B, N)
    # Activations go through the MXU in bf16, so loosen tolerance vs f32 ref.
    assert jnp.allclose(out, ref, atol=1e-1, rtol=2e-2), "mismatch vs reference"

    print("KERNEL_OK")
</pallas_src>

<mosaic_0001>
module attributes {stable_mosaic.version = 11 : i64} {
  func.func @qlinear_w4_kernel(%arg0: i32, %arg1: i32, %arg2: i32, %arg3: memref<8x128xbf16, #tpu.memory_space<vmem>>, %arg4: memref<8x128xbf16, #tpu.memory_space<vmem>>, %arg5: memref<128x128xi8, #tpu.memory_space<vmem>>, %arg6: memref<1x128xf32, #tpu.memory_space<vmem>>, %arg7: memref<1x128xf32, #tpu.memory_space<vmem>>, %arg8: memref<1x128xf32, #tpu.memory_space<vmem>>, %arg9: memref<8x1xf32, #tpu.memory_space<vmem>>, %arg10: memref<8x128xf32, #tpu.memory_space<vmem>>) attributes {dimension_semantics = [#tpu.dimension_semantics<parallel>, #tpu.dimension_semantics<parallel>, #tpu.dimension_semantics<arbitrary>], iteration_bounds = array<i64: 1, 2, 2>, scalar_prefetch = 0 : i64, scratch_operands = 0 : i64, tpu.core_type = #tpu.core_type<tc>, window_params = [{transform_indices = @transform_0, window_bounds = array<i64: 8, 128>}, {transform_indices = @transform_1, window_bounds = array<i64: 8, 128>}, {transform_indices = @transform_2, window_bounds = array<i64: 128, 128>}, {transform_indices = @transform_3, window_bounds = array<i64: 1, 128>}, {transform_indices = @transform_4, window_bounds = array<i64: 1, 128>}, {transform_indices = @transform_5, window_bounds = array<i64: 1, 128>}, {transform_indices = @transform_6, window_bounds = array<i64: 8, 1>}, {transform_indices = @transform_7, window_bounds = array<i64: 8, 128>}]} {
    %c0_i32 = arith.constant 0 : i32
    %0 = arith.cmpi eq, %arg2, %c0_i32 : i32
    %1 = arith.extui %0 : i1 to i32
    %c0_i32_0 = arith.constant 0 : i32
    %2 = arith.cmpi ne, %1, %c0_i32_0 : i32
    scf.if %2 {
      %cst_13 = arith.constant 0.000000e+00 : f32
      %24 = vector.broadcast %cst_13 : f32 to vector<8x128xf32>
      %c0_14 = arith.constant 0 : index
      %c0_15 = arith.constant 0 : index
      %25 = vector.load %arg10[%c0_14, %c0_15] : memref<8x128xf32, #tpu.memory_space<vmem>>, vector<8x128xf32>
      tpu.vector_store %arg10[%c0_14, %c0_15], %24 {strides = array<i32>} : memref<8x128xf32, #tpu.memory_space<vmem>>, vector<8x128xf32>,
    } else {
    }
    %c0 = arith.constant 0 : index
    %c0_1 = arith.constant 0 : index
    %3 = vector.load %arg5[%c0, %c0_1] : memref<128x128xi8, #tpu.memory_space<vmem>>, vector<128x128xi8>
    %4 = arith.extsi %3 : vector<128x128xi8> to vector<128x128xi32>
    %c15_i32 = arith.constant 15 : i32
    %5 = vector.broadcast %c15_i32 : i32 to vector<128x128xi32>
    %6 = arith.andi %4, %5 : vector<128x128xi32>
    %7 = arith.sitofp %6 : vector<128x128xi32> to vector<128x128xbf16>
    %c4_i32 = arith.constant 4 : i32
    %8 = vector.broadcast %c4_i32 : i32 to vector<128x128xi32>
    %9 = arith.shrsi %4, %8 : vector<128x128xi32>
    %c15_i32_2 = arith.constant 15 : i32
    %10 = vector.broadcast %c15_i32_2 : i32 to vector<128x128xi32>
    %11 = arith.andi %9, %10 : vector<128x128xi32>
    %12 = arith.sitofp %11 : vector<128x128xi32> to vector<128x128xbf16>
    %c0_3 = arith.constant 0 : index
    %c0_4 = arith.constant 0 : index
    %13 = vector.load %arg10[%c0_3, %c0_4] : memref<8x128xf32, #tpu.memory_space<vmem>>, vector<8x128xf32>
    %c0_5 = arith.constant 0 : index
    %c0_6 = arith.constant 0 : index
    %14 = vector.load %arg3[%c0_5, %c0_6] : memref<8x128xbf16, #tpu.memory_space<vmem>>, vector<8x128xbf16>
    %cst = arith.constant dense<0.000000e+00> : vector<8x128xf32>
    %15 = tpu.matmul %14, %7, %cst {dimension_numbers = #tpu.dot_dimension_numbers<[1], [0], [0], [1], [0, 0, 1, 1], [], []>} : vector<8x128xbf16>, vector<128x128xbf16>, vector<8x128xf32> -> vector<8x128xf32>
    %c0_7 = arith.constant 0 : index
    %c0_8 = arith.constant 0 : index
    %16 = vector.load %arg4[%c0_7, %c0_8] : memref<8x128xbf16, #tpu.memory_space<vmem>>, vector<8x128xbf16>
    %cst_9 = arith.constant dense<0.000000e+00> : vector<8x128xf32>
    %17 = tpu.matmul %16, %12, %cst_9 {dimension_numbers = #tpu.dot_dimension_numbers<[1], [0], [0], [1], [0, 0, 1, 1], [], []>} : vector<8x128xbf16>, vector<128x128xbf16>, vector<8x128xf32> -> vector<8x128xf32>
    %18 = arith.addf %15, %17 : vector<8x128xf32>
    %19 = arith.addf %13, %18 : vector<8x128xf32>
    %c0_10 = arith.constant 0 : index
    %c0_11 = arith.constant 0 : index
    %20 = vector.load %arg10[%c0_10, %c0_11] : memref<8x128xf32, #tpu.memory_space<vmem>>, vector<8x128xf32>
    tpu.vector_store %arg10[%c0_10, %c0_11], %19 {strides = array<i32>} : memref<8x128xf32, #tpu.memory_space<vmem>>, vector<8x128xf32>,
    %c1_i32 = arith.constant 1 : i32
    %21 = arith.cmpi eq, %arg2, %c1_i32 : i32
    %22 = arith.extui %21 : i1 to i32
    %c0_i32_12 = arith.constant 0 : i32
    %23 = arith.cmpi ne, %22, %c0_i32_12 : i32
    scf.if %23 {
      %c0_13 = arith.constant 0 : index
      %c0_14 = arith.constant 0 : index
      %24 = vector.load %arg10[%c0_13, %c0_14] : memref<8x128xf32, #tpu.memory_space<vmem>>, vector<8x128xf32>
      %c0_15 = arith.constant 0 : index
      %c0_16 = arith.constant 0 : index
      %25 = vector.load %arg6[%c0_15, %c0_16] : memref<1x128xf32, #tpu.memory_space<vmem>>, vector<1x128xf32>
      %26 = vector.broadcast %25 : vector<1x128xf32> to vector<8x128xf32>
      %27 = arith.mulf %24, %26 : vector<8x128xf32>
      %c0_17 = arith.constant 0 : index
      %c0_18 = arith.constant 0 : index
      %28 = vector.load %arg9[%c0_17, %c0_18] : memref<8x1xf32, #tpu.memory_space<vmem>>, vector<8x1xf32>
      %c0_19 = arith.constant 0 : index
      %c0_20 = arith.constant 0 : index
      %29 = vector.load %arg7[%c0_19, %c0_20] : memref<1x128xf32, #tpu.memory_space<vmem>>, vector<1x128xf32>
      %30 = vector.broadcast %28 : vector<8x1xf32> to vector<8x128xf32>
      %31 = vector.broadcast %29 : vector<1x128xf32> to vector<8x128xf32>
      %32 = arith.mulf %30, %31 : vector<8x128xf32>
      %33 = arith.subf %27, %32 : vector<8x128xf32>
      %c0_21 = arith.constant 0 : index
      %c0_22 = arith.constant 0 : index
      %34 = vector.load %arg8[%c0_21, %c0_22] : memref<1x128xf32, #tpu.memory_space<vmem>>, vector<1x128xf32>
      %35 = vector.broadcast %34 : vector<1x128xf32> to vector<8x128xf32>
      %36 = arith.addf %33, %35 : vector<8x128xf32>
      %c0_23 = arith.constant 0 : index
      %c0_24 = arith.constant 0 : index
      %37 = vector.load %arg10[%c0_23, %c0_24] : memref<8x128xf32, #tpu.memory_space<vmem>>, vector<8x128xf32>
      tpu.vector_store %arg10[%c0_23, %c0_24], %36 {strides = array<i32>} : memref<8x128xf32, #tpu.memory_space<vmem>>, vector<8x128xf32>,
    } else {
    }
    return
  }
  func.func @transform_0(%arg0: i32, %arg1: i32, %arg2: i32) -> (i32, i32) {
    %c0_i32 = arith.constant 0 : i32
    return %arg0, %arg2 : i32, i32
  }
  func.func @transform_1(%arg0: i32, %arg1: i32, %arg2: i32) -> (i32, i32) {
    %c2_i32 = arith.constant 2 : i32
    %0 = arith.addi %arg2, %c2_i32 : i32
    %c0_i32 = arith.constant 0 : i32
    return %arg0, %0 : i32, i32
  }
  func.func @transform_2(%arg0: i32, %arg1: i32, %arg2: i32) -> (i32, i32) {
    %c0_i32 = arith.constant 0 : i32
    return %arg2, %arg1 : i32, i32
  }
  func.func @transform_3(%arg0: i32, %arg1: i32, %arg2: i32) -> (i32, i32) {
    %c0_i32 = arith.constant 0 : i32
    %c0_i32_0 = arith.constant 0 : i32
    return %c0_i32, %arg1 : i32, i32
  }
  func.func @transform_4(%arg0: i32, %arg1: i32, %arg2: i32) -> (i32, i32) {
    %c0_i32 = arith.constant 0 : i32
    %c0_i32_0 = arith.constant 0 : i32
    return %c0_i32, %arg1 : i32, i32
  }
  func.func @transform_5(%arg0: i32, %arg1: i32, %arg2: i32) -> (i32, i32) {
    %c0_i32 = arith.constant 0 : i32
    %c0_i32_0 = arith.constant 0 : i32
    return %c0_i32, %arg1 : i32, i32
  }
  func.func @transform_6(%arg0: i32, %arg1: i32, %arg2: i32) -> (i32, i32) {
    %c0_i32 = arith.constant 0 : i32
    %c0_i32_0 = arith.constant 0 : i32
    return %arg0, %c0_i32 : i32, i32
  }
  func.func @transform_7(%arg0: i32, %arg1: i32, %arg2: i32) -> (i32, i32) {
    %c0_i32 = arith.constant 0 : i32
    return %arg0, %arg1 : i32, i32
  }
}

</mosaic_0001>

<llo_original>
// kernel: tpu_custom_call.1
$region0: #{tpu_custom_call.1}
  #allocation0 [shape = 'u32[]', space=smem, size = 0x4, offset = 0x4, fixed_abs, tag = 'smem constant byte address 0x4 - core index']
  #allocation1 [shape = 'u32[72,128]{1,0:T(1,128)}', space=vmem, size = 0x9000, scoped, tag = 'internal scratch']
  %s0 = inlined_call_operand.hbm [shape: bf16[8,512], index: 0, kind: input, shape index: {}]
  %s1 = inlined_call_operand.hbm [shape: bf16[8,512], index: 1, kind: input, shape index: {}]
  %s2 = inlined_call_operand.hbm [shape: s8[256,256], index: 2, kind: input, shape index: {}]
  %s3 = inlined_call_operand.vmem [shape: f32[1,256], index: 3, kind: input, shape index: {}]
  %s4 = inlined_call_operand.vmem [shape: f32[1,256], index: 4, kind: input, shape index: {}]
  %s5 = inlined_call_operand.vmem [shape: f32[1,256], index: 5, kind: input, shape index: {}]
  %s6 = inlined_call_operand.vmem [shape: f32[8,1], index: 6, kind: input, shape index: {}]
  %s7 = inlined_call_operand.hbm [shape: f32[8,256], index: 7, kind: output, shape index: {}]
  %s8 = sld [smem:[#allocation0]]
  $region81: #{tpu_custom_call.1} parent=0
    _
  %s10 = ssub.s32 1, %s8
  %s11 = scalar_select 0, %s10, %s8
  $region1: #{tpu_custom_call.1} parent=0
    #allocation2 [shape = 'u8[4096]{0}', space=vmem, size = 0x1000, scoped, tag = 'input window, operand 0']
    #allocation3 [shape = 's32[2]{0}', space=sflag, size = 0x8, scoped, tag = 'scoped memory for tpu_custom_call.1']
    #allocation4 [shape = 's32[2]{0}', space=sflag, size = 0x8, scoped, tag = 'scoped memory for tpu_custom_call.1']
    #allocation5 [shape = 'u8[4096]{0}', space=vmem, size = 0x1000, scoped, tag = 'input window, operand 1']
    #allocation6 [shape = 's32[2]{0}', space=sflag, size = 0x8, scoped, tag = 'scoped memory for tpu_custom_call.1']
    #allocation7 [shape = 'u8[32768]{0}', space=vmem, size = 0x8000, scoped, tag = 'input window, operand 2']
    #allocation8 [shape = 'u8[8192]{0}', space=vmem, size = 0x2000, scoped, tag = 'output window, operand 0']
    %12 = vsyncpa [#allocation3], 0
    %s13 = scalar_lea.sflag [#allocation3], 1
    %14 = vsyncpa %s13, 0
    %15 = vsyncpa [#allocation6], 0
    %s16 = scalar_lea.sflag [#allocation6], 1
    %17 = vsyncpa %s16, 0
    %18 = vsyncpa [#allocation4], 0
    %s19 = scalar_lea.sflag [#allocation4], 1
    %20 = vsyncpa %s19, 0
    loop: start=0, step=1, limit=6
    $region2: #{tpu_custom_call.1} parent=1 // loop_pre_header
      _
    $region3: #{tpu_custom_call.1} parent=1 // loop_header
      %s22 = sphi 0, %s26
      %p23 = scmp.ge.s32.totalorder %s22, 6
      %s29 = sphi 0, %s48
      %s30 = sphi 0, %s44
      %s31 = sphi 0, %s40
      %s32 = sphi 0, %s29
      %s33 = sphi 0, %s30
      %s34 = sphi 0, %s31
      %s35 = sphi 0, %s32
      %s36 = sphi 0, %s33
      %s37 = sphi 0, %s34
      %s53 = sphi 0, %s55
      %s56 = sphi 0, %s53
      %s57 = sphi 0, %s56
      %s73 = sphi 0, %s57
      %s83 = sphi 0, %s85
      %s86 = sphi 0, %s83
      %s87 = sphi 0, %s86
      %s103 = sphi 0, %s87
      %s111 = sphi 0, %s113
      %s114 = sphi 0, %s111
      %s115 = sphi 0, %s114
      %s131 = sphi 0, %s115
      %s137 = sphi 0, %s139
      %s140 = sphi 0, %s137
      %s141 = sphi 0, %s140
      %s157 = sphi 0, %s141
      %s163 = sphi 0, %s165
      %s166 = sphi 0, %s163
      %s167 = sphi 0, %s166
      %s183 = sphi 0, %s167
      %s189 = sphi 0, %s191
      %s192 = sphi 0, %s189
      %s193 = sphi 0, %s192
      %s209 = sphi 0, %s193
      %s215 = sphi 0, %s217
      %s218 = sphi 0, %s215
      %s219 = sphi 0, %s218
      %s235 = sphi 0, %s219
      %s243 = sphi 0, %s245
      %s246 = sphi 0, %s243
      %s247 = sphi 0, %s246
      %s263 = sphi 0, %s247
    $region4: #{tpu_custom_call.1} parent=1 // loop_header_branch
      %25 = sbr.rel (%p23) target = $region8
    $region5: #{tpu_custom_call.1} parent=1 // loop_body
      %s27 = ssub.s32 %s22, 1
      %s28 = ssub.s32 %s22, 2
      %s38 = sadd.s32 1, %s31
      %p39 = scmp.ge.s32.totalorder %s38, 2
      %s40 = scalar_select %p39, 0, %s38
      %s41 = sadd.s32 1, %s30
      %s42 = scalar_select %p39, %s41, %s30
      %p43 = scmp.ge.s32.totalorder %s42, 2
      %s44 = scalar_select %p43, 0, %s42
      %s45 = sadd.s32 1, %s29
      %s46 = scalar_select %p43, %s45, %s29
      %p47 = scmp.ge.s32.totalorder %s46, 1
      %s48 = scalar_select %p47, 0, %s46
      %s49 = ssub.s32 %s29, %s48
      %s50 = ssub.s32 %s31, %s40
      %s51 = sor.u32 %s49, %s50
      %p52 = scmp.eq.s32.totalorder %s51, 0
      %s54 = sadd.s32 %s53, 1
      %s55 = scalar_select %p52, %s53, %s54
      %p58 = pneg %p52
      %p59 = scmp.eq.s32.totalorder %s22, 3
      %p60 = por %p58, %p59
      %p61 = scmp.ne.s32.totalorder %s53, %s56
      %p62 = scmp.eq.s32.totalorder %s22, 0
      %p63 = por %p61, %p62
      %p64 = scmp.ne.s32.totalorder %s53, %s56
      %p65 = scmp.eq.s32.totalorder %s27, 3
      %p66 = por %p64, %p65
      %p67 = scmp.ne.s32.totalorder %s56, %s57
      %p68 = scmp.eq.s32.totalorder %s27, 0
      %p69 = por %p67, %p68
      %p70 = scmp.ne.s32.totalorder %s56, %s57
      %p71 = scmp.eq.s32.totalorder %s28, 3
      %p72 = por %p70, %p71
      %p74 = scmp.ne.s32.totalorder %s57, %s73
      %p75 = scmp.eq.s32.totalorder %s28, 0
      %p76 = por %p74, %p75
      %s77 = sadd.s32 %s31, 2
      %s78 = sadd.s32 %s40, 2
      %s79 = ssub.s32 %s29, %s48
      %s80 = ssub.s32 %s77, %s78
      %s81 = sor.u32 %s79, %s80
      %p82 = scmp.eq.s32.totalorder %s81, 0
      %s84 = sadd.s32 %s83, 1
      %s85 = scalar_select %p82, %s83, %s84
      %p88 = pneg %p82
      %p89 = scmp.eq.s32.totalorder %s22, 3
      %p90 = por %p88, %p89
      %p91 = scmp.ne.s32.totalorder %s83, %s86
      %p92 = scmp.eq.s32.totalorder %s22, 0
      %p93 = por %p91, %p92
      %p94 = scmp.ne.s32.totalorder %s83, %s86
      %p95 = scmp.eq.s32.totalorder %s27, 3
      %p96 = por %p94, %p95
      %p97 = scmp.ne.s32.totalorder %s86, %s87
      %p98 = scmp.eq.s32.totalorder %s27, 0
      %p99 = por %p97, %p98
      %p100 = scmp.ne.s32.totalorder %s86, %s87
      %p101 = scmp.eq.s32.totalorder %s28, 3
      %p102 = por %p100, %p101
      %p104 = scmp.ne.s32.totalorder %s87, %s103
      %p105 = scmp.eq.s32.totalorder %s28, 0
      %p106 = por %p104, %p105
      %s107 = ssub.s32 %s31, %s40
      %s108 = ssub.s32 %s30, %s44
      %s109 = sor.u32 %s107, %s108
      %p110 = scmp.eq.s32.totalorder %s109, 0
      %s112 = sadd.s32 %s111, 1
      %s113 = scalar_select %p110, %s111, %s112
      %p116 = pneg %p110
      %p117 = scmp.eq.s32.totalorder %s22, 3
      %p118 = por %p116, %p117
      %p119 = scmp.ne.s32.totalorder %s111, %s114
      %p120 = scmp.eq.s32.totalorder %s22, 0
      %p121 = por %p119, %p120
      %p122 = scmp.ne.s32.totalorder %s111, %s114
      %p123 = scmp.eq.s32.totalorder %s27, 3
      %p124 = por %p122, %p123
      %p125 = scmp.ne.s32.totalorder %s114, %s115
      %p126 = scmp.eq.s32.totalorder %s27, 0
      %p127 = por %p125, %p126
      %p128 = scmp.ne.s32.totalorder %s114, %s115
      %p129 = scmp.eq.s32.totalorder %s28, 3
      %p130 = por %p128, %p129
      %p132 = scmp.ne.s32.totalorder %s115, %s131
      %p133 = scmp.eq.s32.totalorder %s28, 0
      %p134 = por %p132, %p133
      %s135 = ssub.s32 %s30, %s44
      %p136 = scmp.eq.s32.totalorder %s135, 0
      %s138 = sadd.s32 %s137, 1
      %s139 = scalar_select %p136, %s137, %s138
      %p142 = pneg %p136
      %p143 = scmp.eq.s32.totalorder %s22, 3
      %p144 = por %p142, %p143
      %p145 = scmp.ne.s32.totalorder %s137, %s140
      %p146 = scmp.eq.s32.totalorder %s22, 0
      %p147 = por %p145, %p146
      %p148 = scmp.ne.s32.totalorder %s137, %s140
      %p149 = scmp.eq.s32.totalorder %s27, 3
      %p150 = por %p148, %p149
      %p151 = scmp.ne.s32.totalorder %s140, %s141
      %p152 = scmp.eq.s32.totalorder %s27, 0
      %p153 = por %p151, %p152
      %p154 = scmp.ne.s32.totalorder %s140, %s141
      %p155 = scmp.eq.s32.totalorder %s28, 3
      %p156 = por %p154, %p155
      %p158 = scmp.ne.s32.totalorder %s141, %s157
      %p159 = scmp.eq.s32.totalorder %s28, 0
      %p160 = por %p158, %p159
      %s161 = ssub.s32 %s30, %s44
      %p162 = scmp.eq.s32.totalorder %s161, 0
      %s164 = sadd.s32 %s163, 1
      %s165 = scalar_select %p162, %s163, %s164
      %p168 = pneg %p162
      %p169 = scmp.eq.s32.totalorder %s22, 3
      %p170 = por %p168, %p169
      %p171 = scmp.ne.s32.totalorder %s163, %s166
      %p172 = scmp.eq.s32.totalorder %s22, 0
      %p173 = por %p171, %p172
      %p174 = scmp.ne.s32.totalorder %s163, %s166
      %p175 = scmp.eq.s32.totalorder %s27, 3
      %p176 = por %p174, %p175
      %p177 = scmp.ne.s32.totalorder %s166, %s167
      %p178 = scmp.eq.s32.totalorder %s27, 0
      %p179 = por %p177, %p178
      %p180 = scmp.ne.s32.totalorder %s166, %s167
      %p181 = scmp.eq.s32.totalorder %s28, 3
      %p182 = por %p180, %p181
      %p184 = scmp.ne.s32.totalorder %s167, %s183
      %p185 = scmp.eq.s32.totalorder %s28, 0
      %p186 = por %p184, %p185
      %s187 = ssub.s32 %s30, %s44
      %p188 = scmp.eq.s32.totalorder %s187, 0
      %s190 = sadd.s32 %s189, 1
      %s191 = scalar_select %p188, %s189, %s190
      %p194 = pneg %p188
      %p195 = scmp.eq.s32.totalorder %s22, 3
      %p196 = por %p194, %p195
      %p197 = scmp.ne.s32.totalorder %s189, %s192
      %p198 = scmp.eq.s32.totalorder %s22, 0
      %p199 = por %p197, %p198
      %p200 = scmp.ne.s32.totalorder %s189, %s192
      %p201 = scmp.eq.s32.totalorder %s27, 3
      %p202 = por %p200, %p201
      %p203 = scmp.ne.s32.totalorder %s192, %s193
      %p204 = scmp.eq.s32.totalorder %s27, 0
      %p205 = por %p203, %p204
      %p206 = scmp.ne.s32.totalorder %s192, %s193
      %p207 = scmp.eq.s32.totalorder %s28, 3
      %p208 = por %p206, %p207
      %p210 = scmp.ne.s32.totalorder %s193, %s209
      %p211 = scmp.eq.s32.totalorder %s28, 0
      %p212 = por %p210, %p211
      %s213 = ssub.s32 %s29, %s48
      %p214 = scmp.eq.s32.totalorder %s213, 0
      %s216 = sadd.s32 %s215, 1
      %s217 = scalar_select %p214, %s215, %s216
      %p220 = pneg %p214
      %p221 = scmp.eq.s32.totalorder %s22, 3
      %p222 = por %p220, %p221
      %p223 = scmp.ne.s32.totalorder %s215, %s218
      %p224 = scmp.eq.s32.totalorder %s22, 0
      %p225 = por %p223, %p224
      %p226 = scmp.ne.s32.totalorder %s215, %s218
      %p227 = scmp.eq.s32.totalorder %s27, 3
      %p228 = por %p226, %p227
      %p229 = scmp.ne.s32.totalorder %s218, %s219
      %p230 = scmp.eq.s32.totalorder %s27, 0
      %p231 = por %p229, %p230
      %p232 = scmp.ne.s32.totalorder %s218, %s219
      %p233 = scmp.eq.s32.totalorder %s28, 3
      %p234 = por %p232, %p233
      %p236 = scmp.ne.s32.totalorder %s219, %s235
      %p237 = scmp.eq.s32.totalorder %s28, 0
      %p238 = por %p236, %p237
      %s239 = ssub.s32 %s29, %s48
      %s240 = ssub.s32 %s30, %s44
      %s241 = sor.u32 %s239, %s240
      %p242 = scmp.eq.s32.totalorder %s241, 0
      %s244 = sadd.s32 %s243, 1
      %s245 = scalar_select %p242, %s243, %s244
      %p248 = pneg %p242
      %p249 = scmp.eq.s32.totalorder %s22, 3
      %p250 = por %p248, %p249
      %p251 = scmp.ne.s32.totalorder %s243, %s246
      %p252 = scmp.eq.s32.totalorder %s22, 0
      %p253 = por %p251, %p252
      %p254 = scmp.ne.s32.totalorder %s243, %s246
      %p255 = scmp.eq.s32.totalorder %s27, 3
      %p256 = por %p254, %p255
      %p257 = scmp.ne.s32.totalorder %s246, %s247
      %p258 = scmp.eq.s32.totalorder %s27, 0
      %p259 = por %p257, %p258
      %p260 = scmp.ne.s32.totalorder %s246, %s247
      %p261 = scmp.eq.s32.totalorder %s28, 3
      %p262 = por %p260, %p261
      %p264 = scmp.ne.s32.totalorder %s247, %s263
      %p265 = scmp.eq.s32.totalorder %s28, 0
      %p266 = por %p264, %p265
      %p267 = scmp.le.s32.totalorder 1, %s22
      %p268 = scmp.lt.s32.totalorder %s22, 5
      %p269 = pnand %p267, %p268
      %p270 = pneg %p269
      // Predicated region
      $region9: #{tpu_custom_call.1} parent=5 // pred_check
        _
      $region10: #{tpu_custom_call.1} parent=5 // pred_check_branch
        %272 = sbr.rel (%p269) target = $region12
      $region11: #{tpu_custom_call.1} parent=5 // pred_region
        %s273 = ssub.s32 %s22, 1
        // Predicated region
        $region13: #{tpu_custom_call.1} parent=11 // pred_check
          %p274 = pneg %p231
        $region14: #{tpu_custom_call.1} parent=11 // pred_check_branch
          %276 = sbr.rel (%p274) target = $region16
        $region15: #{tpu_custom_call.1} parent=11 // pred_region
          %p277 = scmp.lt.s32.totalorder %s32, 0
          %s278 = scalar_select %p277, %s32, 0
          %s279 = smul.addr %s278, 8
          %s280 = scalar_lea.vmem %s6, %s279
        $region16: #{tpu_custom_call.1} parent=11 // pred_fallthru
          _
      $region12: #{tpu_custom_call.1} parent=5 // pred_fallthru
        _
      %p281 = scmp.lt.s32.totalorder %s22, 4
      // Predicated region
      $region17: #{tpu_custom_call.1} parent=5 // pred_check
        %p282 = pneg %p281
      $region18: #{tpu_custom_call.1} parent=5 // pred_check_branch
        %284 = sbr.rel (%p282) target = $region20
      $region19: #{tpu_custom_call.1} parent=5 // pred_region
        // Predicated region
        $region21: #{tpu_custom_call.1} parent=19 // pred_check
          %p285 = pneg %p63
        $region22: #{tpu_custom_call.1} parent=19 // pred_check_branch
          %287 = sbr.rel (%p285) target = $region24
        $region23: #{tpu_custom_call.1} parent=19 // pred_region
          %s288 = sand.u32 %s53, 1
          %s289 = scalar_lea.sflag [#allocation3], %s288
          %s290 = sand.u32 %s53, 1
          %s291 = smul.addr %s290, 4
          %s292 = scalar_lea.vmem [#allocation2], %s291
          %294 = vsyncadd %s289, 0
          %s295 = smul.addr %s29, 4
          %s296 = sadd.s32 %s31, %s295
          %s297 = smul.addr %s296, 4
          %s298 = scalar_lea.hbm %s0, %s297
          %s300 = sshll.u32 %s298, 4
          %s301 = int_to_ptr.hbm [resolvable:$true] %s300
          %s302 = sshll.u32 %s292, 4
          %s303 = int_to_ptr.vmem [resolvable:$true] %s302
          %305 = dma.hbm_to_vmem [thread:$0]  %s301, 64, %s303, %s289
        $region24: #{tpu_custom_call.1} parent=19 // pred_fallthru
          _
        // Predicated region
        $region25: #{tpu_custom_call.1} parent=19 // pred_check
          %p306 = pneg %p93
        $region26: #{tpu_custom_call.1} parent=19 // pred_check_branch
          %308 = sbr.rel (%p306) target = $region28
        $region27: #{tpu_custom_call.1} parent=19 // pred_region
          %s309 = sand.u32 %s22, 1
          %s310 = scalar_lea.sflag [#allocation6], %s309
          %s311 = sand.u32 %s83, 1
          %s312 = smul.addr %s311, 4
          %s313 = scalar_lea.vmem [#allocation5], %s312
          %s314 = sadd.s32 %s31, 2
          %316 = vsyncadd %s310, 0
          %s317 = smul.addr %s29, 4
          %s318 = sadd.s32 %s314, %s317
          %s319 = smul.addr %s318, 4
          %s320 = scalar_lea.hbm %s1, %s319
          %s322 = sshll.u32 %s320, 4
          %s323 = int_to_ptr.hbm [resolvable:$true] %s322
          %s324 = sshll.u32 %s313, 4
          %s325 = int_to_ptr.vmem [resolvable:$true] %s324
          %327 = dma.hbm_to_vmem [thread:$0]  %s323, 64, %s325, %s310
        $region28: #{tpu_custom_call.1} parent=19 // pred_fallthru
          _
        // Predicated region
        $region29: #{tpu_custom_call.1} parent=19 // pred_check
          %p328 = pneg %p121
        $region30: #{tpu_custom_call.1} parent=19 // pred_check_branch
          %330 = sbr.rel (%p328) target = $region32
        $region31: #{tpu_custom_call.1} parent=19 // pred_region
          %s331 = sand.u32 %s22, 1
          %s332 = scalar_lea.sflag [#allocation6], %s331
          %s333 = sand.u32 %s111, 1
          %s334 = smul.addr %s333, 32
          %s335 = scalar_lea.vmem [#allocation7], %s334
          %s336 = smul.u32 4, %s31
          %338 = vsyncadd %s332, 0
          %s339 = smul.addr %s336, 2
          %s340 = sadd.s32 %s30, %s339
          %s341 = smul.addr %s340, 8
          %s342 = scalar_lea.hbm %s2, %s341
          %s343 = sshll.u32 %s342, 4
          %s344 = int_to_ptr.hbm [resolvable:$true] %s343
          %s345 = sshll.u32 %s335, 4
          %s346 = int_to_ptr.vmem [resolvable:$true] %s345
          %351 = dma.hbm_to_vmem [thread:$0]  %s344, 512, %s346, %s332, 256, 128, 8
        $region32: #{tpu_custom_call.1} parent=19 // pred_fallthru
          _
        // Predicated region
        $region33: #{tpu_custom_call.1} parent=19 // pred_check
          %p352 = pneg %p147
        $region34: #{tpu_custom_call.1} parent=19 // pred_check_branch
          %354 = sbr.rel (%p352) target = $region36
        $region35: #{tpu_custom_call.1} parent=19 // pred_region
          %p355 = scmp.lt.s32.totalorder %s30, 1
          %s356 = scalar_select %p355, %s30, 1
          %s357 = scalar_lea.vmem %s3, %s356
        $region36: #{tpu_custom_call.1} parent=19 // pred_fallthru
          _
        // Predicated region
        $region37: #{tpu_custom_call.1} parent=19 // pred_check
          %p358 = pneg %p173
        $region38: #{tpu_custom_call.1} parent=19 // pred_check_branch
          %360 = sbr.rel (%p358) target = $region40
        $region39: #{tpu_custom_call.1} parent=19 // pred_region
          %p361 = scmp.lt.s32.totalorder %s30, 1
          %s362 = scalar_select %p361, %s30, 1
          %s363 = scalar_lea.vmem %s4, %s362
        $region40: #{tpu_custom_call.1} parent=19 // pred_fallthru
          _
        // Predicated region
        $region41: #{tpu_custom_call.1} parent=19 // pred_check
          %p364 = pneg %p199
        $region42: #{tpu_custom_call.1} parent=19 // pred_check_branch
          %366 = sbr.rel (%p364) target = $region44
        $region43: #{tpu_custom_call.1} parent=19 // pred_region
          %p367 = scmp.lt.s32.totalorder %s30, 1
          %s368 = scalar_select %p367, %s30, 1
          %s369 = scalar_lea.vmem %s5, %s368
        $region44: #{tpu_custom_call.1} parent=19 // pred_fallthru
          _
      $region20: #{tpu_custom_call.1} parent=5 // pred_fallthru
        _
      %p370 = scmp.le.s32.totalorder 1, %s22
      %p371 = scmp.lt.s32.totalorder %s22, 5
      %p372 = pnand %p370, %p371
      %p373 = pneg %p372
      // Predicated region
      $region45: #{tpu_custom_call.1} parent=5 // pred_check
        _
      $region46: #{tpu_custom_call.1} parent=5 // pred_check_branch
        %375 = sbr.rel (%p372) target = $region48
      $region47: #{tpu_custom_call.1} parent=5 // pred_region
        %s376 = ssub.s32 %s22, 1
        %s377 = sand.u32 %s56, 1
        %s378 = scalar_lea.sflag [#allocation3], %s377
        %s379 = sand.u32 %s56, 1
        %s380 = smul.addr %s379, 4
        %s381 = scalar_lea.vmem [#allocation2], %s380
        // Predicated region
        $region49: #{tpu_custom_call.1} parent=47 // pred_check
          %p382 = pneg %p69
        $region50: #{tpu_custom_call.1} parent=47 // pred_check_branch
          %384 = sbr.rel (%p382) target = $region52
        $region51: #{tpu_custom_call.1} parent=47 // pred_region
          %386 = dma.done %s378, 64
        $region52: #{tpu_custom_call.1} parent=47 // pred_fallthru
          _
        %s387 = sand.u32 %s27, 1
        %s388 = scalar_lea.sflag [#allocation6], %s387
        %s389 = sand.u32 %s86, 1
        %s390 = smul.addr %s389, 4
        %s391 = scalar_lea.vmem [#allocation5], %s390
        // Predicated region
        $region53: #{tpu_custom_call.1} parent=47 // pred_check
          %p392 = pneg %p99
        $region54: #{tpu_custom_call.1} parent=47 // pred_check_branch
          %394 = sbr.rel (%p392) target = $region56
        $region55: #{tpu_custom_call.1} parent=47 // pred_region
          %396 = dma.done %s388, 64
        $region56: #{tpu_custom_call.1} parent=47 // pred_fallthru
          _
        %s397 = sand.u32 %s27, 1
        %s398 = scalar_lea.sflag [#allocation6], %s397
        %s399 = sand.u32 %s114, 1
        %s400 = smul.addr %s399, 32
        %s401 = scalar_lea.vmem [#allocation7], %s400
        // Predicated region
        $region57: #{tpu_custom_call.1} parent=47 // pred_check
          %p402 = pneg %p127
        $region58: #{tpu_custom_call.1} parent=47 // pred_check_branch
          %404 = sbr.rel (%p402) target = $region60
        $region59: #{tpu_custom_call.1} parent=47 // pred_region
          %406 = dma.done %s398, 512
        $region60: #{tpu_custom_call.1} parent=47 // pred_fallthru
          _
        %s407 = sand.u32 %s56, 1
        %s408 = scalar_lea.sflag [#allocation3], %s407
        %s409 = sand.u32 %s56, 1
        %s410 = smul.addr %s409, 4
        %s411 = scalar_lea.vmem [#allocation2], %s410
        %p412 = pneg %p69
        %p413 = pneg %p66
        %s414 = sand.u32 %s27, 1
        %s415 = scalar_lea.sflag [#allocation6], %s414
        %s416 = sand.u32 %s86, 1
        %s417 = smul.addr %s416, 4
        %s418 = scalar_lea.vmem [#allocation5], %s417
        %p419 = pneg %p99
        %p420 = pneg %p96
        %s421 = sand.u32 %s27, 1
        %s422 = scalar_lea.sflag [#allocation6], %s421
        %s423 = sand.u32 %s114, 1
        %s424 = smul.addr %s423, 32
        %s425 = scalar_lea.vmem [#allocation7], %s424
        %p426 = pneg %p127
        %p427 = pneg %p124
        %p428 = scmp.lt.s32.totalorder %s33, 1
        %s429 = scalar_select %p428, %s33, 1
        %s430 = scalar_lea.vmem %s3, %s429
        %p431 = pneg %p153
        %p432 = pneg %p150
        %p433 = scmp.lt.s32.totalorder %s33, 1
        %s434 = scalar_select %p433, %s33, 1
        %s435 = scalar_lea.vmem %s4, %s434
        %p436 = pneg %p179
        %p437 = pneg %p176
        %p438 = scmp.lt.s32.totalorder %s33, 1
        %s439 = scalar_select %p438, %s33, 1
        %s440 = scalar_lea.vmem %s5, %s439
        %p441 = pneg %p205
        %p442 = pneg %p202
        %p443 = scmp.lt.s32.totalorder %s32, 0
        %s444 = scalar_select %p443, %s32, 0
        %s445 = smul.addr %s444, 8
        %s446 = scalar_lea.vmem %s6, %s445
        %p447 = pneg %p231
        %p448 = pneg %p228
        %p449 = pneg %p259
        %p450 = pneg %p256
        %s451 = sand.u32 %s246, 1
        %s452 = scalar_lea.sflag [#allocation4], %s451
        %s453 = sand.u32 %s246, 1
        %s454 = smul.addr %s453, 8
        %s455 = scalar_lea.vmem [#allocation8], %s454
        %s456 = sadd.s32 %s34, 2
        %s457 = smul.u32 4, %s34
        %p458 = scmp.lt.s32.totalorder %s33, 1
        %s459 = scalar_select %p458, %s33, 1
        %s460 = scalar_lea.vmem %s3, %s459
        %p461 = scmp.lt.s32.totalorder %s33, 1
        %s462 = scalar_select %p461, %s33, 1
        %s463 = scalar_lea.vmem %s4, %s462
        %p464 = scmp.lt.s32.totalorder %s33, 1
        %s465 = scalar_select %p464, %s33, 1
        %s466 = scalar_lea.vmem %s5, %s465
        %p467 = scmp.lt.s32.totalorder %s32, 0
        %s468 = scalar_select %p467, %s32, 0
        %s469 = smul.addr %s468, 8
        %s470 = scalar_lea.vmem %s6, %s469
        %p471 = scmp.eq.s32.totalorder %s34, 0
        // Predicated region
        $region61: #{tpu_custom_call.1} parent=47 // pred_check
          %p472 = pneg %p471
        $region62: #{tpu_custom_call.1} parent=47 // pred_check_branch
          %474 = sbr.rel (%p472) target = $region64
        $region63: #{tpu_custom_call.1} parent=47 // pred_region
          %475 = vst [vmem:[%s455] sm:$0xff] 0.0
        $region64: #{tpu_custom_call.1} parent=47 // pred_fallthru
          _
        %v476 = vld [vmem:[%s401] sm:$0xff]
        %v477 = vld [vmem:[%s401 + $0x8] sm:$0xff]
        %v478 = vld [vmem:[%s401 + $0x10] sm:$0xff]
        %v479 = vld [vmem:[%s401 + $0x18] sm:$0xff]
        %v480 = vunpack.c.0.s8 %v476
        %v481 = vunpack.c.1.s8 %v476
        %v482 = vunpack.c.2.s8 %v476
        %v483 = vunpack.c.3.s8 %v476
        %v484 = vunpack.c.0.s8 %v477
        %v485 = vunpack.c.1.s8 %v477
        %v486 = vunpack.c.2.s8 %v477
        %v487 = vunpack.c.3.s8 %v477
        %v488 = vunpack.c.0.s8 %v478
        %v489 = vunpack.c.1.s8 %v478
        %v490 = vunpack.c.2.s8 %v478
        %v491 = vunpack.c.3.s8 %v478
        %v492 = vunpack.c.0.s8 %v479
        %v493 = vunpack.c.1.s8 %v479
        %v494 = vunpack.c.2.s8 %v479
        %v495 = vunpack.c.3.s8 %v479
        %v496 = vand.u32 %v480, 15
        %v497 = vand.u32 %v481, 15
        %v498 = vand.u32 %v482, 15
        %v499 = vand.u32 %v483, 15
        %v500 = vand.u32 %v484, 15
        %v501 = vand.u32 %v485, 15
        %v502 = vand.u32 %v486, 15
        %v503 = vand.u32 %v487, 15
        %v504 = vand.u32 %v488, 15
        %v505 = vand.u32 %v489, 15
        %v506 = vand.u32 %v490, 15
        %v507 = vand.u32 %v491, 15
        %v508 = vand.u32 %v492, 15
        %v509 = vand.u32 %v493, 15
        %v510 = vand.u32 %v494, 15
        %v511 = vand.u32 %v495, 15
        %v512 = vcvt.s32.f32 %v496
        %v513 = vcvt.s32.f32 %v497
        %v514 = vcvt.s32.f32 %v498
        %v515 = vcvt.s32.f32 %v499
        %v516 = vcvt.s32.f32 %v500
        %v517 = vcvt.s32.f32 %v501
        %v518 = vcvt.s32.f32 %v502
        %v519 = vcvt.s32.f32 %v503
        %v520 = vcvt.s32.f32 %v504
        %v521 = vcvt.s32.f32 %v505
        %v522 = vcvt.s32.f32 %v506
        %v523 = vcvt.s32.f32 %v507
        %v524 = vcvt.s32.f32 %v508
        %v525 = vcvt.s32.f32 %v509
        %v526 = vcvt.s32.f32 %v510
        %v527 = vcvt.s32.f32 %v511
        %v528 = vpack.c.bf16 %v513, %v512
        %v529 = vpack.c.bf16 %v515, %v514
        %v530 = vpack.c.bf16 %v517, %v516
        %v531 = vpack.c.bf16 %v519, %v518
        %v532 = vpack.c.bf16 %v521, %v520
        %v533 = vpack.c.bf16 %v523, %v522
        %v534 = vpack.c.bf16 %v525, %v524
        %v535 = vpack.c.bf16 %v527, %v526
        %v536 = vshra.s32 %v480, 4
        %v537 = vshra.s32 %v481, 4
        %v538 = vshra.s32 %v482, 4
        %v539 = vshra.s32 %v483, 4
        %v540 = vshra.s32 %v484, 4
        %v541 = vshra.s32 %v485, 4
        %v542 = vshra.s32 %v486, 4
        %v543 = vshra.s32 %v487, 4
        %v544 = vshra.s32 %v488, 4
        %v545 = vshra.s32 %v489, 4
        %v546 = vshra.s32 %v490, 4
        %v547 = vshra.s32 %v491, 4
        %v548 = vshra.s32 %v492, 4
        %v549 = vshra.s32 %v493, 4
        %v550 = vshra.s32 %v494, 4
        %v551 = vshra.s32 %v495, 4
        %v552 = vand.u32 %v536, 15
        %v553 = vand.u32 %v537, 15
        %v554 = vand.u32 %v538, 15
        %v555 = vand.u32 %v539, 15
        %v556 = vand.u32 %v540, 15
        %v557 = vand.u32 %v541, 15
        %v558 = vand.u32 %v542, 15
        %v559 = vand.u32 %v543, 15
        %v560 = vand.u32 %v544, 15
        %v561 = vand.u32 %v545, 15
        %v562 = vand.u32 %v546, 15
        %v563 = vand.u32 %v547, 15
        %v564 = vand.u32 %v548, 15
        %v565 = vand.u32 %v549, 15
        %v566 = vand.u32 %v550, 15
        %v567 = vand.u32 %v551, 15
        %v568 = vcvt.s32.f32 %v552
        %v569 = vcvt.s32.f32 %v553
        %v570 = vcvt.s32.f32 %v554
        %v571 = vcvt.s32.f32 %v555
        %v572 = vcvt.s32.f32 %v556
        %v573 = vcvt.s32.f32 %v557
        %v574 = vcvt.s32.f32 %v558
        %v575 = vcvt.s32.f32 %v559
        %v576 = vcvt.s32.f32 %v560
        %v577 = vcvt.s32.f32 %v561
        %v578 = vcvt.s32.f32 %v562
        %v579 = vcvt.s32.f32 %v563
        %v580 = vcvt.s32.f32 %v564
        %v581 = vcvt.s32.f32 %v565
        %v582 = vcvt.s32.f32 %v566
        %v583 = vcvt.s32.f32 %v567
        %v584 = vpack.c.bf16 %v569, %v568
        %v585 = vpack.c.bf16 %v571, %v570
        %v586 = vpack.c.bf16 %v573, %v572
        %v587 = vpack.c.bf16 %v575, %v574
        %v588 = vpack.c.bf16 %v577, %v576
        %v589 = vpack.c.bf16 %v579, %v578
        %v590 = vpack.c.bf16 %v581, %v580
        %v591 = vpack.c.bf16 %v583, %v582
        %v592 = vld [vmem:[%s455] sm:$0xff]
        %v593 = vld [vmem:[%s381] sm:$0xf]
        %v594 = vld [vmem:[%s391] sm:$0xf]
        %595 = vmatpush.bf16.msra.mxu0 %v591
        %596 = vmatpush.bf16.msra.mxu0 %v590
        %597 = vmatpush.bf16.msra.mxu0 %v589
        %598 = vmatpush.bf16.msra.mxu0 %v588
        %599 = vmatpush.bf16.msra.mxu0 %v587
        %600 = vmatpush.bf16.msra.mxu0 %v586
        %601 = vmatpush.bf16.msra.mxu0 %v585
        %602 = vmatpush.bf16.msra.mxu0 %v584
        %603 = vmatmul.bf16.gmra.mxu0 %v594
        %v604 = vpop.f32.mrf.mxu0
        %v605 = vadd.f32 0.0, %v604
        %v606 = vpop.f32.mrf.mxu0
        %607 = vdwg.mxu0
        %608 = vmatpush.bf16.msra.mxu0 %v535
        %609 = vmatpush.bf16.msra.mxu0 %v534
        %610 = vmatpush.bf16.msra.mxu0 %v533
        %611 = vmatpush.bf16.msra.mxu0 %v532
        %612 = vmatpush.bf16.msra.mxu0 %v531
        %613 = vmatpush.bf16.msra.mxu0 %v530
        %614 = vmatpush.bf16.msra.mxu0 %v529
        %615 = vmatpush.bf16.msra.mxu0 %v528
        %616 = vmatmul.bf16.gmra.mxu0 %v593
        %v617 = vpop.f32.mrf.mxu0
        %v618 = vadd.f32 %v605, %v617
        %v619 = vpop.f32.mrf.mxu0
        %620 = vdwg.mxu0
        %v621 = vadd.f32 %v592, %v618
        %622 = vst [vmem:[%s455] sm:$0xff] %v621
        %p623 = scmp.eq.s32.totalorder %s34, 1
        // Predicated region
        $region65: #{tpu_custom_call.1} parent=47 // pred_check
          %p624 = pneg %p623
        $region66: #{tpu_custom_call.1} parent=47 // pred_check_branch
          %626 = sbr.rel (%p624) target = $region68
        $region67: #{tpu_custom_call.1} parent=47 // pred_region
          %v627 = vld [vmem:[%s455] sm:$0xff]
          %v628 = vld [vmem:[%s460] sm:$0x1]
          %v630 = vperm.slane %v628, 0
          %v632 = vmul.f32 %v627, %v630
          %v633 = vld [vmem:[%s470] sm:$0xff]
          %v634 = vld [vmem:[%s463] sm:$0x1]
          %636 = vset.pattern.permute.xlu0 0
          %637 = vperm.xlu0 %636, %v633
          %v638 = vpop.permute.xlu0 %637
          %v641 = vperm.slane %v634, 0
          %v643 = vmul.f32 %v638, %v641
          %v644 = vsub.f32 %v632, %v643
          %v645 = vld [vmem:[%s466] sm:$0x1]
          %v647 = vperm.slane %v645, 0
          %v649 = vadd.f32 %v644, %v647
          %650 = vst [vmem:[%s455] sm:$0xff] %v649
        $region68: #{tpu_custom_call.1} parent=47 // pred_fallthru
          _
        %s651 = sand.u32 %s246, 1
        %s652 = scalar_lea.sflag [#allocation4], %s651
        %s653 = sand.u32 %s246, 1
        %s654 = smul.addr %s653, 8
        %s655 = scalar_lea.vmem [#allocation8], %s654
        // Predicated region
        $region69: #{tpu_custom_call.1} parent=47 // pred_check
          %p656 = pneg %p256
        $region70: #{tpu_custom_call.1} parent=47 // pred_check_branch
          %658 = sbr.rel (%p656) target = $region72
        $region71: #{tpu_custom_call.1} parent=47 // pred_region
          %660 = vsyncadd %s652, 0
          %s661 = smul.addr %s32, 2
          %s662 = sadd.s32 %s33, %s661
          %s663 = smul.addr %s662, 8
          %s664 = scalar_lea.hbm %s7, %s663
          %s666 = sshll.u32 %s655, 4
          %s667 = int_to_ptr.vmem [resolvable:$true] %s666
          %s668 = sshll.u32 %s664, 4
          %s669 = int_to_ptr.hbm [resolvable:$true] %s668
          %671 = dma.vmem_to_hbm [thread:$0]  %s667, 128, %s669, %s652
        $region72: #{tpu_custom_call.1} parent=47 // pred_fallthru
          _
      $region48: #{tpu_custom_call.1} parent=5 // pred_fallthru
        _
      %p672 = scmp.le.s32.totalorder 2, %s22
      // Predicated region
      $region73: #{tpu_custom_call.1} parent=5 // pred_check
        %p673 = pneg %p672
      $region74: #{tpu_custom_call.1} parent=5 // pred_check_branch
        %675 = sbr.rel (%p673) target = $region76
      $region75: #{tpu_custom_call.1} parent=5 // pred_region
        %s676 = ssub.s32 %s22, 2
        // Predicated region
        $region77: #{tpu_custom_call.1} parent=75 // pred_check
          %p677 = pneg %p262
        $region78: #{tpu_custom_call.1} parent=75 // pred_check_branch
          %679 = sbr.rel (%p677) target = $region80
        $region79: #{tpu_custom_call.1} parent=75 // pred_region
          %s680 = sand.u32 %s247, 1
          %s681 = scalar_lea.sflag [#allocation4], %s680
          %s682 = sand.u32 %s247, 1
          %s683 = smul.addr %s682, 8
          %s684 = scalar_lea.vmem [#allocation8], %s683
          %686 = dma.done %s681, 128
        $region80: #{tpu_custom_call.1} parent=75 // pred_fallthru
          _
      $region76: #{tpu_custom_call.1} parent=5 // pred_fallthru
        _
    $region6: #{tpu_custom_call.1} parent=1 // loop_footer
      %s26 = sadd.s32 1, %s22
    $region7: #{tpu_custom_call.1} parent=1 // loop_footer_branch
      %21 = sbr.rel target = $region3
    $region8: #{tpu_custom_call.1} parent=1 // loop_exit
      _
    %687 = vsyncpa [#allocation3], 1
    %s688 = scalar_lea.sflag [#allocation3], 1
    %689 = vsyncpa %s688, 1
    %690 = vsyncpa [#allocation6], 1
    %s691 = scalar_lea.sflag [#allocation6], 1
    %692 = vsyncpa %s691, 1
    %693 = vsyncpa [#allocation4], 1
    %s694 = scalar_lea.sflag [#allocation4], 1
    %695 = vsyncpa %s694, 1

</llo_original>
